<compile_context>
chip_gen: v5e
topology: v5e:2x2
jax: 0.10.0
libtpu: 0.0.40
codegen_flags: <defaults>
</compile_context>

<pallas_src>
import functools

import jax
import jax.numpy as jnp
import numpy as np
from jax.experimental import pallas as pl
from jax.experimental.pallas import tpu as pltpu


def _round_up(n, m):
    return ((n + m - 1) // m) * m


def _round_down(n, m):
    return (n // m) * m


def _cdiv(a, b):
    return (a + b - 1) // b


def _vq_kernel(x_ref, cb_ref, cbsq_ref, code_ref, emb_ref, loss_ref, *,
               l_valid, kc, nk, bf16_scores):
    # x_ref:    (1, C, TL)          cb_ref:  (K_pad, C)     cbsq_ref: (K_pad, 1)
    # code_ref: (1, 1, TL) int32    emb_ref: (1, C, TL)     loss_ref: (1, 1, 1) f32
    l_idx = pl.program_id(1)

    x = x_ref[0].astype(jnp.float32)                 # (C, TL), L on lanes
    c_dim, tl = x.shape
    x_s = x.astype(jnp.bfloat16) if bf16_scores else x

    # Hoisted out of the K-chunk loop (JAX does not CSE broadcast_in_dim).
    k_iota = jax.lax.broadcasted_iota(jnp.int32, (kc, tl), 0)

    def chunk_body(ci, carry):
        best_score, best_code, best_emb = carry
        k0 = pl.multiple_of(ci * kc, 8)
        cb_c = cb_ref[pl.ds(k0, kc), :].astype(jnp.float32)     # (kc, C)
        sq_c = cbsq_ref[pl.ds(k0, kc), :]                       # (kc, 1); -inf on padded rows

        # torch.argmax(torch.cdist(x^T, cb), dim=2):
        #   cdist = sqrt(||x||^2 - 2 x.c + ||c||^2); sqrt is monotone and ||x||^2
        #   is constant over k, so argmax_k cdist == argmax_k (||c_k||^2 - 2 x.c_k).
        lhs = cb_c.astype(jnp.bfloat16) if bf16_scores else cb_c
        cx = jax.lax.dot_general(lhs, x_s, (((1,), (0,)), ((), ())),
                                 preferred_element_type=jnp.float32)   # (kc, TL)
        score = sq_c - 2.0 * cx                                        # (kc, TL)

        c_max = jnp.max(score, axis=0, keepdims=True)                  # (1, TL)
        # first index attaining the max (torch.argmax tie-break = first occurrence)
        loc = jnp.min(jnp.where(score == c_max, k_iota, kc),
                      axis=0, keepdims=True)                           # (1, TL)

        # gather this chunk's winning row: codebook_chunk^T @ onehot -> (C, TL)
        onehot = (k_iota == loc).astype(jnp.float32)
        c_emb = jax.lax.dot_general(cb_c, onehot, (((0,), (0,)), ((), ())),
                                    preferred_element_type=jnp.float32)

        better = c_max > best_score     # strict '>' keeps the earliest chunk on ties
        return (jnp.where(better, c_max, best_score),
                jnp.where(better, loc + ci * kc, best_code),
                jnp.where(better, c_emb, best_emb))

    init = (jnp.full((1, tl), -jnp.inf, dtype=jnp.float32),
            jnp.zeros((1, tl), dtype=jnp.int32),
            jnp.zeros((c_dim, tl), dtype=jnp.float32))
    _, code, emb = jax.lax.fori_loop(0, nk, chunk_body, init)

    code_ref[0] = code
    emb_ref[0] = emb.astype(emb_ref.dtype)

    # Loss partial: SSE over VALID positions, accumulated across the L grid axis
    # into a per-batch resident accumulator block.  The boundary block's
    # out-of-range lanes hold unspecified data, so mask with a select (not mul).
    # beta * (emb.detach() - emb)^2 is identically zero in the forward value.
    pos = l_idx * tl + jax.lax.broadcasted_iota(jnp.int32, (1, tl), 1)
    diff = jnp.where(pos < l_valid, x - emb, 0.0)                      # (C, TL)
    sse = jnp.sum(diff * diff, axis=(0, 1), keepdims=True)             # (1, 1)

    @pl.when(l_idx == 0)
    def _():
        loss_ref[0] = sse

    @pl.when(l_idx != 0)
    def _():
        loss_ref[0] = loss_ref[0] + sse


def vector_quantizer_forward(x, codebook, beta=0.25, *, tile_l=None, k_chunk=None,
                             bf16_scores=False):
    """x: (B, C, L) float (PyTorch NCL layout); codebook: (K, C).

    Returns (code (B, L) int32, emb (B, C, L) in codebook.dtype, loss scalar f32).
    `bf16_scores=True` runs the distance matmul in bf16 (faster on v6e/v7x MXU);
    near-tie argmax results can differ from the f32 path, so it defaults off.
    """
    B, C, L = x.shape
    K, C2 = codebook.shape
    assert C == C2

    x_size = jnp.dtype(x.dtype).itemsize
    e_size = jnp.dtype(codebook.dtype).itemsize

    # ---- L tiling: lane-dense, auto-sized to ~1 MiB x/emb blocks.  No padded
    # copy of x and no output re-slice: grid = (B, cdiv(L, TL)) over the raw
    # arrays; Pallas clips the boundary block and the loss masks it in-kernel.
    if tile_l is not None:
        tl = max(128, _round_down(int(tile_l), 128))
    else:
        tl = (1 << 20) // max(C * max(x_size, e_size), 1)
        tl = _round_down(min(max(tl, 512), 8192), 128)
    if L <= tl:
        TL = L                      # single exact block along L (no masked stores)
    else:
        TL = tl                     # multiple of 128; last block is partial
    NL = _cdiv(L, TL)
    # v7x megacore: give the 2 TensorCores at least one grid step each when we can.
    if B * NL < 2 and L > 256:
        TL = max(128, _round_up(_cdiv(L, 2), 128))
        NL = _cdiv(L, TL)

    # ---- K chunking: keep the (kc, TL) f32 intermediates bounded (~2 MiB) so
    # the in-kernel footprint is independent of codebook size (v7x: 64 MiB VMEM).
    if k_chunk is not None:
        kc = _round_up(max(8, int(k_chunk)), 8)
    else:
        kc = max(8, (2 << 20) // max(TL * 4, 1))
    kc = _round_up(min(kc, _round_up(K, 8)), 8)
    K_pad = _round_up(K, kc)
    NK = K_pad // kc

    # Hoist ||c_k||^2 out of the per-step body (computed once).  Padded rows get
    # -inf so they can never win the argmax.
    cb_f32 = codebook.astype(jnp.float32)
    cb_sq = jnp.sum(cb_f32 * cb_f32, axis=1, keepdims=True)
    if K_pad != K:
        codebook_in = jnp.pad(codebook, ((0, K_pad - K), (0, 0)))
        cb_sq = jnp.pad(cb_sq, ((0, K_pad - K), (0, 0)), constant_values=-jnp.inf)
    else:
        codebook_in = codebook

    kernel = functools.partial(_vq_kernel, l_valid=L, kc=kc, nk=NK,
                               bf16_scores=bf16_scores)

    out_shapes = (
        jax.ShapeDtypeStruct((B, 1, L), jnp.int32),          # code
        jax.ShapeDtypeStruct((B, C, L), codebook.dtype),     # embeddings
        jax.ShapeDtypeStruct((B, 1, 1), jnp.float32),        # per-batch SSE
    )
    grid_spec = pltpu.PrefetchScalarGridSpec(
        num_scalar_prefetch=0,
        grid=(B, NL),
        in_specs=[
            pl.BlockSpec((1, C, TL), lambda b, l: (b, 0, l)),
            pl.BlockSpec((K_pad, C), lambda b, l: (0, 0)),
            pl.BlockSpec((K_pad, 1), lambda b, l: (0, 0)),
        ],
        out_specs=[
            pl.BlockSpec((1, 1, TL), lambda b, l: (b, 0, l)),
            pl.BlockSpec((1, C, TL), lambda b, l: (b, 0, l)),
            pl.BlockSpec((1, 1, 1), lambda b, l: (b, 0, 0)),   # resident across L
        ],
    )

    # ---- explicit VMEM budget: double-buffered I/O blocks + resident codebook
    # + chunked compute intermediates, 1.5x headroom, floored at 32 MiB.
    def _vmem2d(rows, cols, itemsize):
        return _round_up(max(rows, 1), 8) * _round_up(max(cols, 1), 128) * itemsize

    io_bytes = 2 * (_vmem2d(C, TL, x_size) + _vmem2d(C, TL, e_size)
                    + _vmem2d(1, TL, 4) + _vmem2d(1, 1, 4)
                    + _vmem2d(K_pad, C, e_size) + _vmem2d(K_pad, 1, 4))
    compute_bytes = (3 * _vmem2d(kc, TL, 4)      # cx / score / onehot chunk
                     + 3 * _vmem2d(C, TL, 4)     # x(f32) / running emb / chunk emb
                     + 8 * _vmem2d(1, TL, 4))    # row temporaries
    vmem_limit = int(min(max((io_bytes + compute_bytes) * 1.5, 32 * 2**20),
                         100 * 2**20))

    code3, emb, loss_sse = pl.pallas_call(
        kernel,
        out_shape=out_shapes,
        grid_spec=grid_spec,
        compiler_params=pltpu.CompilerParams(
            # Loss accumulates across the L axis -> "arbitrary"; batch axis is
            # independent -> "parallel" (megacore sharding on v7x).
            dimension_semantics=("parallel", "arbitrary"),
            vmem_limit_bytes=vmem_limit),
    )(x, codebook_in, cb_sq)

    code = code3.reshape(B, L)   # metadata-only squeeze, no copy
    # TODO(synk): the PyTorch source returns the unbound `.mean` method (missing
    # parentheses); we return the evaluated mean, which is what was intended.
    loss = jnp.sum(loss_sse) / (B * C * L)
    del beta  # beta-weighted commitment term is exactly zero in forward value
    return code, emb, loss


def _reference(x, codebook, beta=0.25):
    xt = jnp.transpose(x, (0, 2, 1))                                 # (B, L, C)
    d = jnp.sqrt(
        jnp.sum((xt[:, :, None, :] - codebook[None, None, :, :]) ** 2, axis=-1))
    code = jnp.argmax(d, axis=2)
    emb = jnp.transpose(codebook[code], (0, 2, 1))
    loss = jnp.mean((x - emb) ** 2 + beta * (emb - emb) ** 2)
    return code, emb, loss


if __name__ == "__main__":
    key = jax.random.PRNGKey(0)
    k_cb, k_x = jax.random.split(key)

    B, C, L = 2, 4, 600   # L not a multiple of 128 -> exercises the clipped boundary block
    K = 20                # codebook_size; not a multiple of the K-chunk -> exercises K padding
    codebook = jax.random.normal(k_cb, (K, C), dtype=jnp.float32)    # ~ torch.randn
    x = jax.random.normal(k_x, (B, C, L), dtype=jnp.float32)

    code_r, emb_r, loss_r = _reference(x, codebook, beta=0.25)

    # 1) explicit small tiles: multi-tile L with a partial last block + chunked K loop.
    code, emb, loss = vector_quantizer_forward(x, codebook, beta=0.25,
                                               tile_l=256, k_chunk=8)
    jax.block_until_ready((code, emb, loss))
    np.testing.assert_array_equal(np.asarray(code), np.asarray(code_r))
    np.testing.assert_allclose(np.asarray(emb), np.asarray(emb_r), rtol=1e-5, atol=1e-5)
    np.testing.assert_allclose(float(loss), float(loss_r), rtol=1e-5, atol=1e-6)

    # 2) default auto-sized tiles (single exact L block, single K chunk).
    code, emb, loss = vector_quantizer_forward(x, codebook, beta=0.25)
    jax.block_until_ready((code, emb, loss))
    np.testing.assert_array_equal(np.asarray(code), np.asarray(code_r))
    np.testing.assert_allclose(np.asarray(emb), np.asarray(emb_r), rtol=1e-5, atol=1e-5)
    np.testing.assert_allclose(float(loss), float(loss_r), rtol=1e-5, atol=1e-6)

    print("KERNEL_OK")
</pallas_src>

<mosaic_0001>
module attributes {stable_mosaic.version = 11 : i64} {
  func.func @_vq_kernel(%arg0: i32, %arg1: i32, %arg2: memref<1x4x256xf32, #tpu.memory_space<vmem>>, %arg3: memref<24x4xf32, #tpu.memory_space<vmem>>, %arg4: memref<24x1xf32, #tpu.memory_space<vmem>>, %arg5: memref<1x1x256xi32, #tpu.memory_space<vmem>>, %arg6: memref<1x4x256xf32, #tpu.memory_space<vmem>>, %arg7: memref<1x1x1xf32, #tpu.memory_space<vmem>>) attributes {dimension_semantics = [#tpu.dimension_semantics<parallel>, #tpu.dimension_semantics<arbitrary>], iteration_bounds = array<i64: 2, 3>, scalar_prefetch = 0 : i64, scratch_operands = 0 : i64, tpu.core_type = #tpu.core_type<tc>, window_params = [{transform_indices = @transform_0, window_bounds = array<i64: 1, 4, 256>}, {pipeline_mode = #tpu.pipeline_mode<synchronous>, transform_indices = @transform_1, window_bounds = array<i64: 24, 4>}, {pipeline_mode = #tpu.pipeline_mode<synchronous>, transform_indices = @transform_2, window_bounds = array<i64: 24, 1>}, {transform_indices = @transform_3, window_bounds = array<i64: 1, 1, 256>}, {transform_indices = @transform_4, window_bounds = array<i64: 1, 4, 256>}, {transform_indices = @transform_5, window_bounds = array<i64: 1, 1, 1>}]} {
    %c0 = arith.constant 0 : index
    %c0_0 = arith.constant 0 : index
    %c0_1 = arith.constant 0 : index
    %0 = vector.load %arg2[%c0, %c0_0, %c0_1] : memref<1x4x256xf32, #tpu.memory_space<vmem>>, vector<1x4x256xf32>
    %1 = vector.shape_cast %0 : vector<1x4x256xf32> to vector<4x256xf32>
    %2 = tpu.iota {dimensions = array<i32: 0>} : vector<8x256xi32>
    %cst = arith.constant 0xFF800000 : f32
    %3 = vector.broadcast %cst : f32 to vector<1x256xf32>
    %c0_i32 = arith.constant 0 : i32
    %4 = vector.broadcast %c0_i32 : i32 to vector<1x256xi32>
    %cst_2 = arith.constant 0.000000e+00 : f32
    %5 = vector.broadcast %cst_2 : f32 to vector<4x256xf32>
    %c0_i32_3 = arith.constant 0 : i32
    %c3_i32 = arith.constant 3 : i32
    %6 = arith.addi %c0_i32_3, %c3_i32 : i32
    %c1_i32 = arith.constant 1 : i32
    %7:3 = scf.for %arg8 = %c0_i32_3 to %6 step %c1_i32 iter_args(%arg9 = %3, %arg10 = %4, %arg11 = %5) -> (vector<1x256xf32>, vector<1x256xi32>, vector<4x256xf32>)  : i32 {
      %c8_i32 = arith.constant 8 : i32
      %37 = arith.muli %arg8, %c8_i32 : i32
      %38 = tpu.assume_multiple %37, 8 : i32
      %39 = arith.index_cast %38 : i32 to index
      %c0_17 = arith.constant 0 : index
      %40 = vector.load %arg3[%39, %c0_17] : memref<24x4xf32, #tpu.memory_space<vmem>>, vector<8x4xf32>
      %41 = arith.index_cast %38 : i32 to index
      %c0_18 = arith.constant 0 : index
      %42 = vector.load %arg4[%41, %c0_18] : memref<24x1xf32, #tpu.memory_space<vmem>>, vector<8x1xf32>
      %cst_19 = arith.constant dense<0.000000e+00> : vector<8x256xf32>
      %43 = tpu.matmul %40, %1, %cst_19 {dimension_numbers = #tpu.dot_dimension_numbers<[1], [0], [0], [1], [0, 0, 1, 1], [], []>} : vector<8x4xf32>, vector<4x256xf32>, vector<8x256xf32> -> vector<8x256xf32>
      %cst_20 = arith.constant 2.000000e+00 : f32
      %44 = vector.broadcast %cst_20 : f32 to vector<8x256xf32>
      %45 = arith.mulf %44, %43 : vector<8x256xf32>
      %46 = vector.broadcast %42 : vector<8x1xf32> to vector<8x256xf32>
      %47 = arith.subf %46, %45 : vector<8x256xf32>
      %cst_21 = arith.constant dense<0xFF800000> : vector<256xf32>
      %48 = vector.multi_reduction <maximumf>, %47, %cst_21 [0] : vector<8x256xf32> to vector<256xf32>
      %49 = vector.shape_cast %48 : vector<256xf32> to vector<1x256xf32>
      %50 = vector.broadcast %49 : vector<1x256xf32> to vector<8x256xf32>
      %51 = arith.cmpf oeq, %47, %50 : vector<8x256xf32>
      %c8_i32_22 = arith.constant 8 : i32
      %52 = vector.broadcast %c8_i32_22 : i32 to vector<8x256xi32>
      %53 = arith.select %51, %2, %52 : vector<8x256xi1>, vector<8x256xi32>
      %cst_23 = arith.constant dense<2147483647> : vector<256xi32>
      %54 = vector.multi_reduction <minsi>, %53, %cst_23 [0] : vector<8x256xi32> to vector<256xi32>
      %55 = vector.shape_cast %54 : vector<256xi32> to vector<1x256xi32>
      %56 = vector.broadcast %55 : vector<1x256xi32> to vector<8x256xi32>
      %57 = arith.cmpi eq, %2, %56 : vector<8x256xi32>
      %58 = arith.extui %57 : vector<8x256xi1> to vector<8x256xi32>
      %59 = arith.sitofp %58 : vector<8x256xi32> to vector<8x256xf32>
      %cst_24 = arith.constant dense<0.000000e+00> : vector<4x256xf32>
      %60 = tpu.matmul %40, %59, %cst_24 {dimension_numbers = #tpu.dot_dimension_numbers<[0], [0], [1], [1], [0, 1, 1, 1], [], []>} : vector<8x4xf32>, vector<8x256xf32>, vector<4x256xf32> -> vector<4x256xf32>
      %61 = arith.cmpf ogt, %49, %arg9 : vector<1x256xf32>
      %62 = arith.select %61, %49, %arg9 : vector<1x256xi1>, vector<1x256xf32>
      %c8_i32_25 = arith.constant 8 : i32
      %63 = arith.muli %arg8, %c8_i32_25 : i32
      %64 = vector.broadcast %63 : i32 to vector<1x256xi32>
      %65 = arith.addi %55, %64 : vector<1x256xi32>
      %66 = arith.select %61, %65, %arg10 : vector<1x256xi1>, vector<1x256xi32>
      %67 = vector.shape_cast %61 : vector<1x256xi1> to vector<1x256xi1>
      %68 = vector.broadcast %67 : vector<1x256xi1> to vector<4x256xi1>
      %69 = arith.select %68, %60, %arg11 : vector<4x256xi1>, vector<4x256xf32>
      scf.yield %62, %66, %69 : vector<1x256xf32>, vector<1x256xi32>, vector<4x256xf32>
    }
    %c3_i32_4 = arith.constant 3 : i32
    %c0_5 = arith.constant 0 : index
    %c0_6 = arith.constant 0 : index
    %c0_7 = arith.constant 0 : index
    %8 = vector.load %arg5[%c0_5, %c0_6, %c0_7] : memref<1x1x256xi32, #tpu.memory_space<vmem>>, vector<1x1x256xi32>
    %9 = vector.shape_cast %8 : vector<1x1x256xi32> to vector<1x256xi32>
    %10 = vector.shape_cast %7#1 : vector<1x256xi32> to vector<1x1x256xi32>
    tpu.vector_store %arg5[%c0_5, %c0_6, %c0_7], %10 {strides = array<i32>} : memref<1x1x256xi32, #tpu.memory_space<vmem>>, vector<1x1x256xi32>,
    %c0_8 = arith.constant 0 : index
    %c0_9 = arith.constant 0 : index
    %c0_10 = arith.constant 0 : index
    %11 = vector.load %arg6[%c0_8, %c0_9, %c0_10] : memref<1x4x256xf32, #tpu.memory_space<vmem>>, vector<1x4x256xf32>
    %12 = vector.shape_cast %11 : vector<1x4x256xf32> to vector<4x256xf32>
    %13 = vector.shape_cast %7#2 : vector<4x256xf32> to vector<1x4x256xf32>
    tpu.vector_store %arg6[%c0_8, %c0_9, %c0_10], %13 {strides = array<i32>} : memref<1x4x256xf32, #tpu.memory_space<vmem>>, vector<1x4x256xf32>,
    %c256_i32 = arith.constant 256 : i32
    %14 = arith.muli %arg1, %c256_i32 : i32
    %15 = tpu.iota {dimensions = array<i32: 1>} : vector<1x256xi32>
    %16 = vector.broadcast %14 : i32 to vector<1x256xi32>
    %17 = arith.addi %16, %15 : vector<1x256xi32>
    %c600_i32 = arith.constant 600 : i32
    %18 = vector.broadcast %c600_i32 : i32 to vector<1x256xi32>
    %19 = arith.cmpi slt, %17, %18 : vector<1x256xi32>
    %20 = arith.subf %1, %7#2 : vector<4x256xf32>
    %cst_11 = arith.constant 0.000000e+00 : f32
    %21 = vector.shape_cast %19 : vector<1x256xi1> to vector<1x256xi1>
    %22 = vector.broadcast %21 : vector<1x256xi1> to vector<4x256xi1>
    %23 = vector.broadcast %cst_11 : f32 to vector<4x256xf32>
    %24 = arith.select %22, %20, %23 : vector<4x256xi1>, vector<4x256xf32>
    %25 = arith.mulf %24, %24 : vector<4x256xf32>
    %26 = vector.shape_cast %25 : vector<4x256xf32> to vector<1x4x256xf32>
    %cst_12 = arith.constant dense<0.000000e+00> : vector<1xf32>
    %27 = vector.multi_reduction <add>, %26, %cst_12 [1, 2] : vector<1x4x256xf32> to vector<1xf32>
    %28 = vector.shape_cast %27 : vector<1xf32> to vector<1x1x1xf32>
    %29 = vector.extract %28[0, 0, 0] : f32 from vector<1x1x1xf32>
    %30 = vector.broadcast %29 : f32 to vector<1x1xf32>
    %c0_i32_13 = arith.constant 0 : i32
    %31 = arith.cmpi eq, %arg1, %c0_i32_13 : i32
    %32 = arith.extui %31 : i1 to i32
    %c0_i32_14 = arith.constant 0 : i32
    %33 = arith.cmpi ne, %32, %c0_i32_14 : i32
    scf.if %33 {
      %c0_17 = arith.constant 0 : index
      %c0_18 = arith.constant 0 : index
      %c0_19 = arith.constant 0 : index
      %37 = vector.load %arg7[%c0_17, %c0_18, %c0_19] : memref<1x1x1xf32, #tpu.memory_space<vmem>>, vector<1x1x1xf32>
      %38 = vector.shape_cast %37 : vector<1x1x1xf32> to vector<1x1xf32>
      %39 = vector.shape_cast %30 : vector<1x1xf32> to vector<1x1x1xf32>
      tpu.vector_store %arg7[%c0_17, %c0_18, %c0_19], %39 {strides = array<i32>} : memref<1x1x1xf32, #tpu.memory_space<vmem>>, vector<1x1x1xf32>,
    } else {
    }
    %c0_i32_15 = arith.constant 0 : i32
    %34 = arith.cmpi ne, %arg1, %c0_i32_15 : i32
    %35 = arith.extui %34 : i1 to i32
    %c0_i32_16 = arith.constant 0 : i32
    %36 = arith.cmpi ne, %35, %c0_i32_16 : i32
    scf.if %36 {
      %c0_17 = arith.constant 0 : index
      %c0_18 = arith.constant 0 : index
      %c0_19 = arith.constant 0 : index
      %37 = vector.load %arg7[%c0_17, %c0_18, %c0_19] : memref<1x1x1xf32, #tpu.memory_space<vmem>>, vector<1x1x1xf32>
      %38 = vector.shape_cast %37 : vector<1x1x1xf32> to vector<1x1xf32>
      %39 = arith.addf %38, %30 : vector<1x1xf32>
      %c0_20 = arith.constant 0 : index
      %c0_21 = arith.constant 0 : index
      %c0_22 = arith.constant 0 : index
      %40 = vector.load %arg7[%c0_20, %c0_21, %c0_22] : memref<1x1x1xf32, #tpu.memory_space<vmem>>, vector<1x1x1xf32>
      %41 = vector.shape_cast %40 : vector<1x1x1xf32> to vector<1x1xf32>
      %42 = vector.shape_cast %39 : vector<1x1xf32> to vector<1x1x1xf32>
      tpu.vector_store %arg7[%c0_20, %c0_21, %c0_22], %42 {strides = array<i32>} : memref<1x1x1xf32, #tpu.memory_space<vmem>>, vector<1x1x1xf32>,
    } else {
    }
    return
  }
  func.func @transform_0(%arg0: i32, %arg1: i32) -> (i32, i32, i32) {
    %c0_i32 = arith.constant 0 : i32
    %c0_i32_0 = arith.constant 0 : i32
    return %arg0, %c0_i32, %arg1 : i32, i32, i32
  }
  func.func @transform_1(%arg0: i32, %arg1: i32) -> (i32, i32) {
    %c0_i32 = arith.constant 0 : i32
    %c0_i32_0 = arith.constant 0 : i32
    %c0_i32_1 = arith.constant 0 : i32
    return %c0_i32, %c0_i32_0 : i32, i32
  }
  func.func @transform_2(%arg0: i32, %arg1: i32) -> (i32, i32) {
    %c0_i32 = arith.constant 0 : i32
    %c0_i32_0 = arith.constant 0 : i32
    %c0_i32_1 = arith.constant 0 : i32
    return %c0_i32, %c0_i32_0 : i32, i32
  }
  func.func @transform_3(%arg0: i32, %arg1: i32) -> (i32, i32, i32) {
    %c0_i32 = arith.constant 0 : i32
    %c0_i32_0 = arith.constant 0 : i32
    return %arg0, %c0_i32, %arg1 : i32, i32, i32
  }
  func.func @transform_4(%arg0: i32, %arg1: i32) -> (i32, i32, i32) {
    %c0_i32 = arith.constant 0 : i32
    %c0_i32_0 = arith.constant 0 : i32
    return %arg0, %c0_i32, %arg1 : i32, i32, i32
  }
  func.func @transform_5(%arg0: i32, %arg1: i32) -> (i32, i32, i32) {
    %c0_i32 = arith.constant 0 : i32
    %c0_i32_0 = arith.constant 0 : i32
    %c0_i32_1 = arith.constant 0 : i32
    return %arg0, %c0_i32, %c0_i32_0 : i32, i32, i32
  }
}

</mosaic_0001>

<llo_original>
// kernel: tpu_custom_call.1
$region0: #{tpu_custom_call.1}
  #allocation0 [shape = 'u32[]', space=smem, size = 0x4, offset = 0x4, fixed_abs, tag = 'smem constant byte address 0x4 - core index']
  #allocation1 [shape = 'u32[72,128]{1,0:T(1,128)}', space=vmem, size = 0x9000, scoped, tag = 'internal scratch']
  %s0 = inlined_call_operand.vmem [shape: f32[2,4,600], index: 0, kind: input, shape index: {}]
  %s1 = inlined_call_operand.vmem [shape: f32[24,4], index: 1, kind: input, shape index: {}]
  %s2 = inlined_call_operand.vmem [shape: f32[24,1], index: 2, kind: input, shape index: {}]
  %s3 = inlined_call_operand.hbm [shape: s32[2,1,600], index: 3, kind: output, shape index: {0}]
  %s4 = inlined_call_operand.hbm [shape: f32[2,4,600], index: 4, kind: output, shape index: {1}]
  %s5 = inlined_call_operand.vmem [shape: f32[2,1,1], index: 5, kind: output, shape index: {2}]
  %6 = xla_tuple %s3, %s4, %s5
  %s7 = sld [smem:[#allocation0]]
  $region76: #{tpu_custom_call.1} parent=0
    _
  %s9 = ssub.s32 1, %s7
  %s10 = scalar_select 0, %s9, %s7
  $region1: #{tpu_custom_call.1} parent=0
    #allocation2 [shape = 'u8[2048]{0}', space=vmem, size = 0x800, scoped, tag = 'output window, operand 0']
    #allocation3 [shape = 's32[2]{0}', space=sflag, size = 0x8, scoped, tag = 'scoped memory for tpu_custom_call.1']
    #allocation4 [shape = 'u8[8192]{0}', space=vmem, size = 0x2000, scoped, tag = 'output window, operand 1']
    #allocation5 [shape = 's32[2]{0}', space=sflag, size = 0x8, scoped, tag = 'scoped memory for tpu_custom_call.1']
    %11 = vsyncpa [#allocation3], 0
    %s12 = scalar_lea.sflag [#allocation3], 1
    %13 = vsyncpa %s12, 0
    %14 = vsyncpa [#allocation5], 0
    %s15 = scalar_lea.sflag [#allocation5], 1
    %16 = vsyncpa %s15, 0
    loop: start=0, step=1, limit=8
    $region2: #{tpu_custom_call.1} parent=1 // loop_pre_header
      _
    $region3: #{tpu_custom_call.1} parent=1 // loop_header
      %s18 = sphi 0, %s22
      %p19 = scmp.ge.s32.totalorder %s18, 8
      %s25 = sphi 0, %s37
      %s26 = sphi 0, %s33
      %s27 = sphi 0, %s25
      %s28 = sphi 0, %s26
      %s29 = sphi 0, %s27
      %s30 = sphi 0, %s28
      %s42 = sphi 0, %s44
      %s45 = sphi 0, %s42
      %s46 = sphi 0, %s45
      %s62 = sphi 0, %s46
      %s66 = sphi 0, %s66
      %s68 = sphi 0, %s66
      %s69 = sphi 0, %s68
      %s83 = sphi 0, %s69
      %s87 = sphi 0, %s87
      %s89 = sphi 0, %s87
      %s90 = sphi 0, %s89
      %s104 = sphi 0, %s90
      %s112 = sphi 0, %s114
      %s115 = sphi 0, %s112
      %s116 = sphi 0, %s115
      %s132 = sphi 0, %s116
      %s140 = sphi 0, %s142
      %s143 = sphi 0, %s140
      %s144 = sphi 0, %s143
      %s160 = sphi 0, %s144
      %s166 = sphi 0, %s168
      %s169 = sphi 0, %s166
      %s170 = sphi 0, %s169
      %s186 = sphi 0, %s170
    $region4: #{tpu_custom_call.1} parent=1 // loop_header_branch
      %21 = sbr.rel (%p19) target = $region8
    $region5: #{tpu_custom_call.1} parent=1 // loop_body
      %s23 = ssub.s32 %s18, 1
      %s24 = ssub.s32 %s18, 2
      %s31 = sadd.s32 1, %s26
      %p32 = scmp.ge.s32.totalorder %s31, 3
      %s33 = scalar_select %p32, 0, %s31
      %s34 = sadd.s32 1, %s25
      %s35 = scalar_select %p32, %s34, %s25
      %p36 = scmp.ge.s32.totalorder %s35, 2
      %s37 = scalar_select %p36, 0, %s35
      %s38 = ssub.s32 %s25, %s37
      %s39 = ssub.s32 %s26, %s33
      %s40 = sor.u32 %s38, %s39
      %p41 = scmp.eq.s32.totalorder %s40, 0
      %s43 = sadd.s32 %s42, 1
      %s44 = scalar_select %p41, %s42, %s43
      %p47 = pneg %p41
      %p48 = scmp.eq.s32.totalorder %s18, 5
      %p49 = por %p47, %p48
      %p50 = scmp.ne.s32.totalorder %s42, %s45
      %p51 = scmp.eq.s32.totalorder %s18, 0
      %p52 = por %p50, %p51
      %p53 = scmp.ne.s32.totalorder %s42, %s45
      %p54 = scmp.eq.s32.totalorder %s23, 5
      %p55 = por %p53, %p54
      %p56 = scmp.ne.s32.totalorder %s45, %s46
      %p57 = scmp.eq.s32.totalorder %s23, 0
      %p58 = por %p56, %p57
      %p59 = scmp.ne.s32.totalorder %s45, %s46
      %p60 = scmp.eq.s32.totalorder %s24, 5
      %p61 = por %p59, %p60
      %p63 = scmp.ne.s32.totalorder %s46, %s62
      %p64 = scmp.eq.s32.totalorder %s24, 0
      %p65 = por %p63, %p64
      %s67 = sadd.s32 %s66, 1
      %p70 = scmp.eq.s32.totalorder %s18, 5
      %p71 = scmp.ne.s32.totalorder %s66, %s68
      %p72 = scmp.eq.s32.totalorder %s18, 0
      %p73 = por %p71, %p72
      %p74 = scmp.ne.s32.totalorder %s66, %s68
      %p75 = scmp.eq.s32.totalorder %s23, 5
      %p76 = por %p74, %p75
      %p77 = scmp.ne.s32.totalorder %s68, %s69
      %p78 = scmp.eq.s32.totalorder %s23, 0
      %p79 = por %p77, %p78
      %p80 = scmp.ne.s32.totalorder %s68, %s69
      %p81 = scmp.eq.s32.totalorder %s24, 5
      %p82 = por %p80, %p81
      %p84 = scmp.ne.s32.totalorder %s69, %s83
      %p85 = scmp.eq.s32.totalorder %s24, 0
      %p86 = por %p84, %p85
      %s88 = sadd.s32 %s87, 1
      %p91 = scmp.eq.s32.totalorder %s18, 5
      %p92 = scmp.ne.s32.totalorder %s87, %s89
      %p93 = scmp.eq.s32.totalorder %s18, 0
      %p94 = por %p92, %p93
      %p95 = scmp.ne.s32.totalorder %s87, %s89
      %p96 = scmp.eq.s32.totalorder %s23, 5
      %p97 = por %p95, %p96
      %p98 = scmp.ne.s32.totalorder %s89, %s90
      %p99 = scmp.eq.s32.totalorder %s23, 0
      %p100 = por %p98, %p99
      %p101 = scmp.ne.s32.totalorder %s89, %s90
      %p102 = scmp.eq.s32.totalorder %s24, 5
      %p103 = por %p101, %p102
      %p105 = scmp.ne.s32.totalorder %s90, %s104
      %p106 = scmp.eq.s32.totalorder %s24, 0
      %p107 = por %p105, %p106
      %s108 = ssub.s32 %s25, %s37
      %s109 = ssub.s32 %s26, %s33
      %s110 = sor.u32 %s108, %s109
      %p111 = scmp.eq.s32.totalorder %s110, 0
      %s113 = sadd.s32 %s112, 1
      %s114 = scalar_select %p111, %s112, %s113
      %p117 = pneg %p111
      %p118 = scmp.eq.s32.totalorder %s18, 5
      %p119 = por %p117, %p118
      %p120 = scmp.ne.s32.totalorder %s112, %s115
      %p121 = scmp.eq.s32.totalorder %s18, 0
      %p122 = por %p120, %p121
      %p123 = scmp.ne.s32.totalorder %s112, %s115
      %p124 = scmp.eq.s32.totalorder %s23, 5
      %p125 = por %p123, %p124
      %p126 = scmp.ne.s32.totalorder %s115, %s116
      %p127 = scmp.eq.s32.totalorder %s23, 0
      %p128 = por %p126, %p127
      %p129 = scmp.ne.s32.totalorder %s115, %s116
      %p130 = scmp.eq.s32.totalorder %s24, 5
      %p131 = por %p129, %p130
      %p133 = scmp.ne.s32.totalorder %s116, %s132
      %p134 = scmp.eq.s32.totalorder %s24, 0
      %p135 = por %p133, %p134
      %s136 = ssub.s32 %s25, %s37
      %s137 = ssub.s32 %s26, %s33
      %s138 = sor.u32 %s136, %s137
      %p139 = scmp.eq.s32.totalorder %s138, 0
      %s141 = sadd.s32 %s140, 1
      %s142 = scalar_select %p139, %s140, %s141
      %p145 = pneg %p139
      %p146 = scmp.eq.s32.totalorder %s18, 5
      %p147 = por %p145, %p146
      %p148 = scmp.ne.s32.totalorder %s140, %s143
      %p149 = scmp.eq.s32.totalorder %s18, 0
      %p150 = por %p148, %p149
      %p151 = scmp.ne.s32.totalorder %s140, %s143
      %p152 = scmp.eq.s32.totalorder %s23, 5
      %p153 = por %p151, %p152
      %p154 = scmp.ne.s32.totalorder %s143, %s144
      %p155 = scmp.eq.s32.totalorder %s23, 0
      %p156 = por %p154, %p155
      %p157 = scmp.ne.s32.totalorder %s143, %s144
      %p158 = scmp.eq.s32.totalorder %s24, 5
      %p159 = por %p157, %p158
      %p161 = scmp.ne.s32.totalorder %s144, %s160
      %p162 = scmp.eq.s32.totalorder %s24, 0
      %p163 = por %p161, %p162
      %s164 = ssub.s32 %s25, %s37
      %p165 = scmp.eq.s32.totalorder %s164, 0
      %s167 = sadd.s32 %s166, 1
      %s168 = scalar_select %p165, %s166, %s167
      %p171 = pneg %p165
      %p172 = scmp.eq.s32.totalorder %s18, 5
      %p173 = por %p171, %p172
      %p174 = scmp.ne.s32.totalorder %s166, %s169
      %p175 = scmp.eq.s32.totalorder %s18, 0
      %p176 = por %p174, %p175
      %p177 = scmp.ne.s32.totalorder %s166, %s169
      %p178 = scmp.eq.s32.totalorder %s23, 5
      %p179 = por %p177, %p178
      %p180 = scmp.ne.s32.totalorder %s169, %s170
      %p181 = scmp.eq.s32.totalorder %s23, 0
      %p182 = por %p180, %p181
      %p183 = scmp.ne.s32.totalorder %s169, %s170
      %p184 = scmp.eq.s32.totalorder %s24, 5
      %p185 = por %p183, %p184
      %p187 = scmp.ne.s32.totalorder %s170, %s186
      %p188 = scmp.eq.s32.totalorder %s24, 0
      %p189 = por %p187, %p188
      %p190 = scmp.le.s32.totalorder 1, %s18
      %p191 = scmp.lt.s32.totalorder %s18, 7
      %p192 = pnand %p190, %p191
      %p193 = pneg %p192
      // Predicated region
      $region9: #{tpu_custom_call.1} parent=5 // pred_check
        _
      $region10: #{tpu_custom_call.1} parent=5 // pred_check_branch
        %195 = sbr.rel (%p192) target = $region12
      $region11: #{tpu_custom_call.1} parent=5 // pred_region
        %s196 = ssub.s32 %s18, 1
        // Predicated region
        $region13: #{tpu_custom_call.1} parent=11 // pred_check
          %p197 = pneg %p79
        $region14: #{tpu_custom_call.1} parent=11 // pred_check_branch
          %199 = sbr.rel (%p197) target = $region16
        $region15: #{tpu_custom_call.1} parent=11 // pred_region
          _
        $region16: #{tpu_custom_call.1} parent=11 // pred_fallthru
          _
        // Predicated region
        $region17: #{tpu_custom_call.1} parent=11 // pred_check
          %p200 = pneg %p100
        $region18: #{tpu_custom_call.1} parent=11 // pred_check_branch
          %202 = sbr.rel (%p200) target = $region20
        $region19: #{tpu_custom_call.1} parent=11 // pred_region
          _
        $region20: #{tpu_custom_call.1} parent=11 // pred_fallthru
          _
      $region12: #{tpu_custom_call.1} parent=5 // pred_fallthru
        _
      %p203 = scmp.lt.s32.totalorder %s18, 6
      // Predicated region
      $region21: #{tpu_custom_call.1} parent=5 // pred_check
        %p204 = pneg %p203
      $region22: #{tpu_custom_call.1} parent=5 // pred_check_branch
        %206 = sbr.rel (%p204) target = $region24
      $region23: #{tpu_custom_call.1} parent=5 // pred_region
        // Predicated region
        $region25: #{tpu_custom_call.1} parent=23 // pred_check
          %p207 = pneg %p52
        $region26: #{tpu_custom_call.1} parent=23 // pred_check_branch
          %209 = sbr.rel (%p207) target = $region28
        $region27: #{tpu_custom_call.1} parent=23 // pred_region
          %s210 = smul.u32 2, %s26
          %s211 = ssub.s32 5, %s210
          %p212 = scmp.lt.s32.totalorder %s211, 2
          %s213 = scalar_select %p212, %s211, 2
          %s214 = smul.u32 4, %s213
          %p215 = scmp.lt.s32.totalorder %s25, 1
          %s216 = scalar_select %p215, %s25, 1
          %p217 = scmp.lt.s32.totalorder %s210, 4
          %s218 = scalar_select %p217, %s210, 4
          %s219 = smul.addr %s216, 5
          %s220 = sadd.s32 %s218, %s219
          %s221 = smul.addr %s220, 4
          %s222 = scalar_lea.vmem %s0, %s221
          %s223 = smul.u32 2, %s26
          %s224 = ssub.s32 5, %s223
          %p225 = scmp.lt.s32.totalorder %s224, 2
          %s226 = scalar_select %p225, %s224, 2
          %s227 = smul.u32 4, %s226
        $region28: #{tpu_custom_call.1} parent=23 // pred_fallthru
          _
      $region24: #{tpu_custom_call.1} parent=5 // pred_fallthru
        _
      %p228 = scmp.le.s32.totalorder 1, %s18
      %p229 = scmp.lt.s32.totalorder %s18, 7
      %p230 = pnand %p228, %p229
      %p231 = pneg %p230
      // Predicated region
      $region29: #{tpu_custom_call.1} parent=5 // pred_check
        _
      $region30: #{tpu_custom_call.1} parent=5 // pred_check_branch
        %233 = sbr.rel (%p230) target = $region32
      $region31: #{tpu_custom_call.1} parent=5 // pred_region
        %s234 = ssub.s32 %s18, 1
        %s235 = smul.u32 2, %s28
        %s236 = ssub.s32 5, %s235
        %p237 = scmp.lt.s32.totalorder %s236, 2
        %s238 = scalar_select %p237, %s236, 2
        %s239 = smul.u32 4, %s238
        %p240 = scmp.lt.s32.totalorder %s27, 1
        %s241 = scalar_select %p240, %s27, 1
        %p242 = scmp.lt.s32.totalorder %s235, 4
        %s243 = scalar_select %p242, %s235, 4
        %s244 = smul.addr %s241, 5
        %s245 = sadd.s32 %s243, %s244
        %s246 = smul.addr %s245, 4
        %s247 = scalar_lea.vmem %s0, %s246
        %p248 = pneg %p58
        %p249 = pneg %p55
        %p250 = pneg %p79
        %p251 = pneg %p76
        %p252 = pneg %p100
        %p253 = pneg %p97
        %p254 = pneg %p128
        %p255 = pneg %p125
        %s256 = sand.u32 %s115, 1
        %s257 = scalar_lea.sflag [#allocation3], %s256
        %s258 = sand.u32 %s115, 1
        %s259 = smul.addr %s258, 2
        %s260 = scalar_lea.vmem [#allocation2], %s259
        %p261 = pneg %p156
        %p262 = pneg %p153
        %s263 = sand.u32 %s143, 1
        %s264 = scalar_lea.sflag [#allocation5], %s263
        %s265 = sand.u32 %s143, 1
        %s266 = smul.addr %s265, 8
        %s267 = scalar_lea.vmem [#allocation4], %s266
        %p268 = pneg %p182
        %p269 = pneg %p179
        %p270 = scmp.lt.s32.totalorder %s27, 1
        %s271 = scalar_select %p270, %s27, 1
        %s272 = scalar_lea.vmem %s5, %s271
        %s273 = smul.u32 2, %s28
        %s274 = ssub.s32 5, %s273
        %p275 = scmp.lt.s32.totalorder %s274, 2
        %s276 = scalar_select %p275, %s274, 2
        %s277 = smul.u32 4, %s276
        %p278 = scmp.lt.s32.totalorder %s27, 1
        %s279 = scalar_select %p278, %s27, 1
        %p280 = scmp.lt.s32.totalorder %s273, 4
        %s281 = scalar_select %p280, %s273, 4
        %s282 = smul.addr %s279, 5
        %s283 = sadd.s32 %s281, %s282
        %s284 = smul.addr %s283, 4
        %s285 = scalar_lea.vmem %s0, %s284
        %s286 = smul.u32 2, %s28
        %s287 = ssub.s32 5, %s286
        %p288 = scmp.lt.s32.totalorder %s287, 2
        %s289 = scalar_select %p288, %s287, 2
        %s290 = smul.u32 4, %s289
        %s291 = smul.u32 2, %s28
        %s292 = ssub.s32 5, %s291
        %p293 = scmp.lt.s32.totalorder %s292, 2
        %s294 = scalar_select %p293, %s292, 2
        %s295 = smul.u32 2, %s28
        %s296 = ssub.s32 5, %s295
        %p297 = scmp.lt.s32.totalorder %s296, 2
        %s298 = scalar_select %p297, %s296, 2
        %s299 = smul.u32 4, %s298
        %p300 = scmp.lt.s32.totalorder %s27, 1
        %s301 = scalar_select %p300, %s27, 1
        %s302 = scalar_lea.vmem %s5, %s301
        %v303 = vld [vmem:[%s285] sm:$0xff]
        %v304 = vlaneseq
        %v305 = vshrl.u32 %v304, 7
        loop: start=0, step=1, limit=3
        $region33: #{tpu_custom_call.1} parent=31 // loop_pre_header
          _
        $region34: #{tpu_custom_call.1} parent=31 // loop_header
          %s307 = sphi 0, %s311
          %p308 = scmp.ge.s32.totalorder %s307, 3
          %v312 = vphi -inf, %v503
          %v313 = vphi -inf, %v504
          %v314 = vphi 0, %v508
          %v315 = vphi 0, %v509
          %v316 = vphi 0.0, %v514
          %v317 = vphi 0.0, %v515
        $region35: #{tpu_custom_call.1} parent=31 // loop_header_branch
          %310 = sbr.rel (%p308) target = $region39
        $region36: #{tpu_custom_call.1} parent=31 // loop_body
          %s318 = smul.u32 %s307, 8
          %s319 = scalar_lea.vmem %s1, %s318
          %v320 = vld [vmem:[%s319] sm:$0xff]
          %s321 = scalar_lea.vmem %s2, %s318
          %v322 = vld [vmem:[%s321] sm:$0xff]
          %324 = vst [vmem:[#allocation1] ss:$2 sm:$0xff] %v303
          %v325 = vld.sshfl [vmem:[#allocation1] sm:$0xff pattern:$0x75316420]
          %v326 = vld.sshfl [vmem:[#allocation1 + $0x8] sm:$0xff pattern:$0x75316420]
          %vm327 = vcmask 31744
          %v329 = vsel %vm327, %v320, 0
          %vm331 = vcmask 1043456
          %v332 = vsel %vm331, %v325, 0
          %v334 = vsel %vm331, %v326, 0
          %336 = vmatpush.msra.mxu0 0.0
          %337 = vmatpush.msra.mxu0 0.0
          %338 = vmatpush.msra.mxu0 0.0
          %339 = vmatpush.msra.mxu0 0.0
          %340 = vmatpush.msra.mxu0 0.0
          %341 = vmatpush.msra.mxu0 0.0
          %342 = vmatpush.msra.mxu0 0.0
          %343 = vmatpush.msra.mxu0 0.0
          %344 = vmatpush.msra.mxu0 0.0
          %345 = vmatpush.msra.mxu0 0.0
          %346 = vmatpush.msra.mxu0 0.0
          %347 = vmatpush.msra.mxu0 0.0
          %348 = vmatpush.msra.mxu0 0.0
          %349 = vmatpush.msra.mxu0 0.0
          %350 = vmatpush.msra.mxu0 0.0
          %351 = vmatpush.msra.mxu0 %v332
          %352 = vmatmul.f32.gmra.mxu0 %v329
          %v353 = vpop.f32.mrf.mxu0
          %v354 = vadd.f32 0.0, %v353
          %355 = vdwg.mxu0
          %356 = vmatpush.msra.mxu0 0.0
          %357 = vmatpush.msra.mxu0 0.0
          %358 = vmatpush.msra.mxu0 0.0
          %359 = vmatpush.msra.mxu0 0.0
          %360 = vmatpush.msra.mxu0 0.0
          %361 = vmatpush.msra.mxu0 0.0
          %362 = vmatpush.msra.mxu0 0.0
          %363 = vmatpush.msra.mxu0 0.0
          %364 = vmatpush.msra.mxu0 0.0
          %365 = vmatpush.msra.mxu0 0.0
          %366 = vmatpush.msra.mxu0 0.0
          %367 = vmatpush.msra.mxu0 0.0
          %368 = vmatpush.msra.mxu0 0.0
          %369 = vmatpush.msra.mxu0 0.0
          %370 = vmatpush.msra.mxu0 0.0
          %371 = vmatpush.msra.mxu0 %v334
          %372 = vmatmul.f32.gmra.mxu0 %v329
          %v373 = vpop.f32.mrf.mxu0
          %v374 = vadd.f32 0.0, %v373
          %375 = vdwg.mxu0
          %v376 = vmul.f32 %v354, 2.0
          %v377 = vmul.f32 %v374, 2.0
          %379 = vset.pattern.permute.xlu0 0
          %380 = vperm.xlu0 %379, %v322
          %v381 = vpop.permute.xlu0 %380
          %v383 = vsub.f32 %v381, %v376
          %v384 = vsub.f32 %v381, %v377
          %v385 = vrot.slane %v383, 4
          %v386 = vmax.f32 %v383, %v385
          %v387 = vrot.slane %v386, 2
          %v388 = vmax.f32 %v386, %v387
          %v389 = vrot.slane %v388, 1
          %v390 = vmax.f32 %v388, %v389
          %v391 = vrot.slane %v384, 4
          %v392 = vmax.f32 %v384, %v391
          %v393 = vrot.slane %v392, 2
          %v394 = vmax.f32 %v392, %v393
          %v395 = vrot.slane %v394, 1
          %v396 = vmax.f32 %v394, %v395
          %vm397 = vcmp.eq.f32.partialorder %v383, %v390
          %vm398 = vcmp.eq.f32.partialorder %v384, %v396
          %v399 = vsel %vm397, %v305, 8
          %v400 = vsel %vm398, %v305, 8
          %v401 = vrot.slane %v399, 4
          %vm402 = vcmp.lt.s32.totalorder %v399, %v401
          %v403 = vsel %vm402, %v399, %v401
          %v404 = vrot.slane %v403, 2
          %vm405 = vcmp.lt.s32.totalorder %v403, %v404
          %v406 = vsel %vm405, %v403, %v404
          %v407 = vrot.slane %v406, 1
          %vm408 = vcmp.lt.s32.totalorder %v406, %v407
          %v409 = vsel %vm408, %v406, %v407
          %v410 = vrot.slane %v400, 4
          %vm411 = vcmp.lt.s32.totalorder %v400, %v410
          %v412 = vsel %vm411, %v400, %v410
          %v413 = vrot.slane %v412, 2
          %vm414 = vcmp.lt.s32.totalorder %v412, %v413
          %v415 = vsel %vm414, %v412, %v413
          %v416 = vrot.slane %v415, 1
          %vm417 = vcmp.lt.s32.totalorder %v415, %v416
          %v418 = vsel %vm417, %v415, %v416
          %vm419 = vcmp.eq.s32.totalorder %v305, %v409
          %vm420 = vcmp.eq.s32.totalorder %v305, %v418
          %v421 = vsel %vm419, 1, 0
          %v422 = vsel %vm420, 1, 0
          %v423 = vcvt.s32.f32 %v421
          %v424 = vcvt.s32.f32 %v422
          %425 = vxpose.xlu0.b32.start [1/16] %v320, 128
          %426 = vxpose.xlu0.b32.cont [2/16] 0.0, 128
          %427 = vxpose.xlu0.b32.cont [3/16] 0.0, 128
          %428 = vxpose.xlu0.b32.cont [4/16] 0.0, 128
          %429 = vxpose.xlu0.b32.cont [5/16] 0.0, 128
          %430 = vxpose.xlu0.b32.cont [6/16] 0.0, 128
          %431 = vxpose.xlu0.b32.cont [7/16] 0.0, 128
          %432 = vxpose.xlu0.b32.cont [8/16] 0.0, 128
          %433 = vxpose.xlu0.b32.cont [9/16] 0.0, 128
          %434 = vxpose.xlu0.b32.cont [10/16] 0.0, 128
          %435 = vxpose.xlu0.b32.cont [11/16] 0.0, 128
          %436 = vxpose.xlu0.b32.cont [12/16] 0.0, 128
          %437 = vxpose.xlu0.b32.cont [13/16] 0.0, 128
          %438 = vxpose.xlu0.b32.cont [14/16] 0.0, 128
          %439 = vxpose.xlu0.b32.cont [15/16] 0.0, 128
          %440 = vxpose.xlu0.b32.end [16/16] 0.0, 128
          %v441 = vpop.trf.xlu0
          %v442 = vpop.trf.xlu0
          %v443 = vpop.trf.xlu0
          %v444 = vpop.trf.xlu0
          %v445 = vpop.trf.xlu0
          %v446 = vpop.trf.xlu0
          %v447 = vpop.trf.xlu0
          %v448 = vpop.trf.xlu0
          %v449 = vpop.trf.xlu0
          %v450 = vpop.trf.xlu0
          %v451 = vpop.trf.xlu0
          %v452 = vpop.trf.xlu0
          %v453 = vpop.trf.xlu0
          %v454 = vpop.trf.xlu0
          %v455 = vpop.trf.xlu0
          %v456 = vpop.trf.xlu0
          %vm457 = vcmask 64512
          %v459 = vsel %vm457, %v441, 0
          %461 = vmatpush.msra.mxu0 0.0
          %462 = vmatpush.msra.mxu0 0.0
          %463 = vmatpush.msra.mxu0 0.0
          %464 = vmatpush.msra.mxu0 0.0
          %465 = vmatpush.msra.mxu0 0.0
          %466 = vmatpush.msra.mxu0 0.0
          %467 = vmatpush.msra.mxu0 0.0
          %468 = vmatpush.msra.mxu0 0.0
          %469 = vmatpush.msra.mxu0 0.0
          %470 = vmatpush.msra.mxu0 0.0
          %471 = vmatpush.msra.mxu0 0.0
          %472 = vmatpush.msra.mxu0 0.0
          %473 = vmatpush.msra.mxu0 0.0
          %474 = vmatpush.msra.mxu0 0.0
          %475 = vmatpush.msra.mxu0 0.0
          %476 = vmatpush.msra.mxu0 %v423
          %477 = vmatmul.f32.gmra.mxu0 %v459
          %v478 = vpop.f32.mrf.mxu0
          %v479 = vadd.f32 0.0, %v478
          %480 = vdwg.mxu0
          %481 = vmatpush.msra.mxu0 0.0
          %482 = vmatpush.msra.mxu0 0.0
          %483 = vmatpush.msra.mxu0 0.0
          %484 = vmatpush.msra.mxu0 0.0
          %485 = vmatpush.msra.mxu0 0.0
          %486 = vmatpush.msra.mxu0 0.0
          %487 = vmatpush.msra.mxu0 0.0
          %488 = vmatpush.msra.mxu0 0.0
          %489 = vmatpush.msra.mxu0 0.0
          %490 = vmatpush.msra.mxu0 0.0
          %491 = vmatpush.msra.mxu0 0.0
          %492 = vmatpush.msra.mxu0 0.0
          %493 = vmatpush.msra.mxu0 0.0
          %494 = vmatpush.msra.mxu0 0.0
          %495 = vmatpush.msra.mxu0 0.0
          %496 = vmatpush.msra.mxu0 %v424
          %497 = vmatmul.f32.gmra.mxu0 %v459
          %v498 = vpop.f32.mrf.mxu0
          %v499 = vadd.f32 0.0, %v498
          %500 = vdwg.mxu0
          %vm501 = vcmp.gt.f32.partialorder %v390, %v312
          %vm502 = vcmp.gt.f32.partialorder %v396, %v313
          %v503 = vsel %vm501, %v390, %v312
          %v504 = vsel %vm502, %v396, %v313
          %v505 = vstv %s318
          %v506 = vadd.s32 %v409, %v505
          %v507 = vadd.s32 %v418, %v505
          %v508 = vsel %vm501, %v506, %v314
          %v509 = vsel %vm502, %v507, %v315
          %v510 = vsel %vm501, 1, 0
          %v511 = vsel %vm502, 1, 0
          %vm512 = vcmp.eq.s32.totalorder %v510, 1
          %vm513 = vcmp.eq.s32.totalorder %v511, 1
          %v514 = vsel %vm512, %v479, %v316
          %v515 = vsel %vm513, %v499, %v317
        $region37: #{tpu_custom_call.1} parent=31 // loop_footer
          %s311 = sadd.s32 1, %s307
        $region38: #{tpu_custom_call.1} parent=31 // loop_footer_branch
          %306 = sbr.rel target = $region34
        $region39: #{tpu_custom_call.1} parent=31 // loop_exit
          _
        %v516 = vrot.slane %v315, 7
        %vm517 = vcmask 1040384
        %v518 = vsel %vm517, %v314, %v516
        %v519 = vlaneseq
        %vm520 = vcmp.ge.s32.totalorder %v519, 0
        %vm521 = vcmp.lt.s32.totalorder %v519, 256
        %vm522 = vmand %vm520, %vm521
        %523 = vst.msk [vmem:[%s260] sm:$0x3] %vm522, %v518
        %v526 = vrot.slane %v317, 4
        %vm527 = vcmask 1043456
        %v528 = vsel %vm527, %v316, %v526
        %530 = vst [vmem:[%s267] sm:$0xff] %v528
        %s531 = smul.u32 %s28, 256
        %v532 = vlaneseq
        %v533 = vand.u32 %v532, 127
        %v534 = vadd.s32 %v533, 128
        %v535 = vstv %s531
        %v536 = vadd.s32 %v535, %v533
        %v537 = vadd.s32 %v535, %v534
        %vm538 = vcmp.lt.s32.totalorder %v536, 600
        %vm539 = vcmp.lt.s32.totalorder %v537, 600
        %v540 = vsub.f32 %v303, %v528
        %v541 = vsel %vm538, 1, 0
        %v542 = vsel %vm539, 1, 0
        %vm543 = vcmp.eq.s32.totalorder %v541, 1
        %vm544 = vcmp.eq.s32.totalorder %v542, 1
        %546 = vst [vmem:[#allocation1] ss:$2 sm:$0xff] %v540
        %v547 = vld.sshfl [vmem:[#allocation1] sm:$0xff pattern:$0x75316420]
        %v548 = vld.sshfl [vmem:[#allocation1 + $0x8] sm:$0xff pattern:$0x75316420]
        %v551 = vsel %vm543, %v547, 0.0
        %v552 = vsel %vm544, %v548, 0.0
        %v553 = vmul.f32 %v551, %v551
        %v554 = vmul.f32 %v552, %v552
        %v555 = vsel %vm527, %v553, 0.0
        %v556 = vsel %vm527, %v554, 0.0
        %v557 = vadd.f32 %v555, %v556
        %558 = vadd.xlane.f32.xlu0 %v557
        %v559 = vpop.xlane.xlu0 %558
        %v560 = vrot.slane %v559, 4
        %v561 = vadd.f32 %v559, %v560
        %v562 = vrot.slane %v561, 2
        %v563 = vadd.f32 %v561, %v562
        %v564 = vrot.slane %v563, 1
        %v565 = vadd.f32 %v563, %v564
        %s566 = vtos %v565
        %v567 = vstv %s566
        %p568 = scmp.eq.s32.totalorder %s28, 0
        // Predicated region
        $region40: #{tpu_custom_call.1} parent=31 // pred_check
          %p569 = pneg %p568
        $region41: #{tpu_custom_call.1} parent=31 // pred_check_branch
          %571 = sbr.rel (%p569) target = $region43
        $region42: #{tpu_custom_call.1} parent=31 // pred_region
          %vm572 = vcmask 0
          %573 = vst.msk [vmem:[%s302] sm:$0x1] %vm572, %v567
        $region43: #{tpu_custom_call.1} parent=31 // pred_fallthru
          _
        %p574 = scmp.ne.s32.totalorder %s28, 0
        // Predicated region
        $region44: #{tpu_custom_call.1} parent=31 // pred_check
          %p575 = pneg %p574
        $region45: #{tpu_custom_call.1} parent=31 // pred_check_branch
          %577 = sbr.rel (%p575) target = $region47
        $region46: #{tpu_custom_call.1} parent=31 // pred_region
          %v578 = vld [vmem:[%s302] sm:$0x1]
          %v579 = vadd.f32 %v578, %v567
          %vm580 = vcmask 0
          %581 = vst.msk [vmem:[%s302] sm:$0x1] %vm580, %v579
        $region47: #{tpu_custom_call.1} parent=31 // pred_fallthru
          _
        %s582 = sand.u32 %s115, 1
        %s583 = scalar_lea.sflag [#allocation3], %s582
        %s584 = sand.u32 %s115, 1
        %s585 = smul.addr %s584, 2
        %s586 = scalar_lea.vmem [#allocation2], %s585
        %s587 = sand.u32 %s143, 1
        %s588 = scalar_lea.sflag [#allocation5], %s587
        %s589 = sand.u32 %s143, 1
        %s590 = smul.addr %s589, 8
        %s591 = scalar_lea.vmem [#allocation4], %s590
        %p592 = scmp.lt.s32.totalorder %s27, 1
        %s593 = scalar_select %p592, %s27, 1
        %s594 = scalar_lea.vmem %s5, %s593
        // Predicated region
        $region48: #{tpu_custom_call.1} parent=31 // pred_check
          %p595 = pneg %p125
        $region49: #{tpu_custom_call.1} parent=31 // pred_check_branch
          %597 = sbr.rel (%p595) target = $region51
        $region50: #{tpu_custom_call.1} parent=31 // pred_region
          %s598 = smul.u32 2, %s28
          %s599 = ssub.s32 5, %s598
          %p600 = scmp.lt.s32.totalorder %s599, 2
          %s601 = scalar_select %p600, %s599, 2
          %s602 = ssub.s32 2, %s601
          %s603 = sshll.u32 %s602, 4
          %604 = vsyncadd %s583, %s603
          %p605 = scmp.ne.s32.totalorder 0, %s601
          %s606 = smul.addr %s27, 5
          %s607 = sadd.s32 %s598, %s606
          %s608 = scalar_lea.hbm %s3, %s607
          %s609 = sshll.u32 %s601, 4
          %s610 = sshll.u32 %s586, 4
          %s611 = int_to_ptr.vmem [resolvable:$true] %s610
          %s612 = sshll.u32 %s608, 4
          %s613 = int_to_ptr.hbm [resolvable:$true] %s612
          %615 = dma.vmem_to_hbm [thread:$0]  (%p605), %s611, %s609, %s613, %s583
        $region51: #{tpu_custom_call.1} parent=31 // pred_fallthru
          _
        // Predicated region
        $region52: #{tpu_custom_call.1} parent=31 // pred_check
          %p616 = pneg %p153
        $region53: #{tpu_custom_call.1} parent=31 // pred_check_branch
          %618 = sbr.rel (%p616) target = $region55
        $region54: #{tpu_custom_call.1} parent=31 // pred_region
          %s619 = smul.u32 2, %s28
          %s620 = ssub.s32 5, %s619
          %p621 = scmp.lt.s32.totalorder %s620, 2
          %s622 = scalar_select %p621, %s620, 2
          %s623 = smul.u32 4, %s622
          %s624 = ssub.s32 8, %s623
          %s625 = sshll.u32 %s624, 4
          %626 = vsyncadd %s588, %s625
          %p627 = scmp.ne.s32.totalorder 0, %s623
          %s628 = smul.addr %s27, 5
          %s629 = sadd.s32 %s619, %s628
          %s630 = smul.addr %s629, 4
          %s631 = scalar_lea.hbm %s4, %s630
          %s632 = smul.u32 %s622, 4
          %s633 = sshll.u32 %s632, 4
          %s634 = sshll.u32 %s591, 4
          %s635 = int_to_ptr.vmem [resolvable:$true] %s634
          %s636 = sshll.u32 %s631, 4
          %s637 = int_to_ptr.hbm [resolvable:$true] %s636
          %639 = dma.vmem_to_hbm [thread:$0]  (%p627), %s635, %s633, %s637, %s588
        $region55: #{tpu_custom_call.1} parent=31 // pred_fallthru
          _
        // Predicated region
        $region56: #{tpu_custom_call.1} parent=31 // pred_check
          %p640 = pneg %p179
        $region57: #{tpu_custom_call.1} parent=31 // pred_check_branch
          %642 = sbr.rel (%p640) target = $region59
        $region58: #{tpu_custom_call.1} parent=31 // pred_region
          _
        $region59: #{tpu_custom_call.1} parent=31 // pred_fallthru
          _
      $region32: #{tpu_custom_call.1} parent=5 // pred_fallthru
        _
      %p643 = scmp.le.s32.totalorder 2, %s18
      // Predicated region
      $region60: #{tpu_custom_call.1} parent=5 // pred_check
        %p644 = pneg %p643
      $region61: #{tpu_custom_call.1} parent=5 // pred_check_branch
        %646 = sbr.rel (%p644) target = $region63
      $region62: #{tpu_custom_call.1} parent=5 // pred_region
        %s647 = ssub.s32 %s18, 2
        // Predicated region
        $region64: #{tpu_custom_call.1} parent=62 // pred_check
          %p648 = pneg %p131
        $region65: #{tpu_custom_call.1} parent=62 // pred_check_branch
          %650 = sbr.rel (%p648) target = $region67
        $region66: #{tpu_custom_call.1} parent=62 // pred_region
          %s651 = sand.u32 %s116, 1
          %s652 = scalar_lea.sflag [#allocation3], %s651
          %s653 = sand.u32 %s116, 1
          %s654 = smul.addr %s653, 2
          %s655 = scalar_lea.vmem [#allocation2], %s654
          %657 = dma.done %s652, 32
        $region67: #{tpu_custom_call.1} parent=62 // pred_fallthru
          _
        // Predicated region
        $region68: #{tpu_custom_call.1} parent=62 // pred_check
          %p658 = pneg %p159
        $region69: #{tpu_custom_call.1} parent=62 // pred_check_branch
          %660 = sbr.rel (%p658) target = $region71
        $region70: #{tpu_custom_call.1} parent=62 // pred_region
          %s661 = sand.u32 %s144, 1
          %s662 = scalar_lea.sflag [#allocation5], %s661
          %s663 = sand.u32 %s144, 1
          %s664 = smul.addr %s663, 8
          %s665 = scalar_lea.vmem [#allocation4], %s664
          %667 = dma.done %s662, 128
        $region71: #{tpu_custom_call.1} parent=62 // pred_fallthru
          _
        // Predicated region
        $region72: #{tpu_custom_call.1} parent=62 // pred_check
          %p668 = pneg %p185
        $region73: #{tpu_custom_call.1} parent=62 // pred_check_branch
          %670 = sbr.rel (%p668) target = $region75
        $region74: #{tpu_custom_call.1} parent=62 // pred_region
          %p671 = scmp.lt.s32.totalorder %s29, 1
          %s672 = scalar_select %p671, %s29, 1
          %s673 = scalar_lea.vmem %s5, %s672
        $region75: #{tpu_custom_call.1} parent=62 // pred_fallthru
          _
      $region63: #{tpu_custom_call.1} parent=5 // pred_fallthru
        _
    $region6: #{tpu_custom_call.1} parent=1 // loop_footer
      %s22 = sadd.s32 1, %s18
    $region7: #{tpu_custom_call.1} parent=1 // loop_footer_branch
      %17 = sbr.rel target = $region3
    $region8: #{tpu_custom_call.1} parent=1 // loop_exit
      _
    %674 = vsyncpa [#allocation3], 1
    %s675 = scalar_lea.sflag [#allocation3], 1
    %676 = vsyncpa %s675, 1
    %677 = vsyncpa [#allocation5], 1
    %s678 = scalar_lea.sflag [#allocation5], 1
    %679 = vsyncpa %s678, 1

</llo_original>
